<compile_context>
chip_gen: v7x
topology: tpu7x:2x2x1
jax: 0.10.0
libtpu: 0.0.40
codegen_flags: <defaults>
</compile_context>

<pallas_src>
import functools

import jax
import jax.numpy as jnp
from jax import lax
from jax.experimental import pallas as pl
from jax.experimental.pallas import tpu as pltpu


def _round_up(x, m):
    return ((x + m - 1) // m) * m


def _cdiv(a, b):
    return -(-a // b)


def _vmem_capacity_bytes():
    """Generation-aware physical VMEM size; conservative fallback = v7x (64 MiB)."""
    try:
        info = pltpu.get_tpu_info()
        cap = getattr(info, "vmem_capacity_bytes", None)
        if cap:
            return int(cap)
    except Exception:
        pass
    return 64 << 20


def _resident_pipeline_kwargs():
    """Single-buffer VMEM-resident operands when the installed Pallas supports it.

    Constant index_maps mean these blocks are DMA'd only once; the default
    2-deep pipelining would just double their VMEM footprint.
    """
    try:
        kw = {"pipeline_mode": pl.Buffered(1)}
        pl.BlockSpec((8, 128), lambda i: (0, 0), **kw)   # feature probe
        return kw
    except Exception:
        return {}


def _vmem_footprint(TB, Vp, Hp, in_itemsize, out_itemsize, mxu_itemsize, w_bufs):
    """Estimated VMEM bytes for one pipelined grid step."""
    f32b = 4
    # Double-buffered batch-tiled inputs: v (Vp), noise_h (Hp), noise_v (Vp).
    inp = 2 * TB * (2 * Vp + Hp) * in_itemsize
    # Double-buffered batch-tiled outputs: v_sample, v_act (Vp), h_act (Hp).
    out = 2 * TB * (2 * Vp + Hp) * out_itemsize
    # Resident weights + biases (w_bufs == 1 when single-buffered).
    wgt = w_bufs * (Vp * Hp * mxu_itemsize + (Vp + Hp) * f32b)
    # Compiler-materialized f32 temporaries (h_pre/h_act/h_smp, v_pre/v_act, casts).
    tmp = TB * (3 * Hp + 3 * Vp) * f32b
    return inp + out + wgt + tmp


def rbm_forward_kernel(v_ref, w_ref, vb_ref, hb_ref, nh_ref, nv_ref,
                       vs_ref, va_ref, ha_ref):
    v = v_ref[...]                       # (TB, Vp)  f32
    w = w_ref[...]                       # (Vp, Hp)  MXU dtype (bf16 or f32)
    vb = vb_ref[...]                     # (1, Vp)   f32
    hb = hb_ref[...]                     # (1, Hp)   f32

    # Hidden activation: relu(v @ W + h_bias)   (MXU, f32 accumulation)
    h_pre = jnp.dot(v.astype(w.dtype), w,
                    preferred_element_type=jnp.float32) + hb
    h_act = jnp.maximum(h_pre, 0.0)
    ha_ref[...] = h_act.astype(ha_ref.dtype)

    # Hidden sample: add Gaussian noise * 0.01   (f32, VPU)
    h_smp = h_act + nh_ref[...] * 0.01

    # Visible activation: relu(h_sample @ W.T + v_bias).
    # NT contraction over the hidden axes — no materialized W^T, no per-step
    # XLU transpose of a VMEM-resident W copy.
    v_pre = lax.dot_general(h_smp.astype(w.dtype), w,
                            dimension_numbers=(((1,), (1,)), ((), ())),
                            preferred_element_type=jnp.float32) + vb
    v_act = jnp.maximum(v_pre, 0.0)
    va_ref[...] = v_act.astype(va_ref.dtype)

    # Visible sample: add Gaussian noise * 0.01
    vs_ref[...] = (v_act + nv_ref[...] * 0.01).astype(vs_ref.dtype)


@functools.partial(jax.jit, static_argnames=("block_batch", "mxu_dtype", "out_dtype"))
def rbm_forward(v, W, v_bias, h_bias, noise_h, noise_v, *,
                block_batch=512, mxu_dtype=jnp.bfloat16, out_dtype=None):
    B, V = v.shape
    H = W.shape[1]
    in_dtype = v.dtype
    out_dtype = in_dtype if out_dtype is None else out_dtype

    # Lane-dense padding: feature dims to multiples of 128.
    Vp = _round_up(V, 128)
    Hp = _round_up(H, 128)

    in_itemsize = jnp.dtype(in_dtype).itemsize
    out_itemsize = jnp.dtype(out_dtype).itemsize
    mxu_itemsize = jnp.dtype(mxu_dtype).itemsize

    resident_kw = _resident_pipeline_kwargs()
    w_bufs = 1 if resident_kw else 2

    # ---- batch tile selection ------------------------------------------------
    #  * multiple of 8 (sublane granularity / (8,128) BlockSpec constraint)
    #  * >= 2 grid steps whenever B > 8, so the "parallel" axis shards across
    #    both v7x TensorCores instead of collapsing to a single step
    #  * tiles divide B as evenly as possible (minimal padded-batch waste)
    n_tiles = max(_cdiv(B, block_batch), 2)
    n_tiles = min(n_tiles, _cdiv(B, 8))        # each tile must hold >= 8 rows
    n_tiles = max(n_tiles, 1)
    TB = _round_up(_cdiv(B, n_tiles), 8)

    # Shrink TB while the estimated footprint (incl. f32 intermediates) exceeds
    # the generation-aware VMEM budget.
    vmem_cap = _vmem_capacity_bytes()
    budget = max(vmem_cap - (16 << 20), 16 << 20)
    while TB > 8 and _vmem_footprint(TB, Vp, Hp, in_itemsize, out_itemsize,
                                     mxu_itemsize, w_bufs) > budget:
        TB = _round_up(TB // 2, 8)
    Bp = _round_up(B, TB)

    # ---- padded operands -------------------------------------------------------
    v_p = jnp.pad(v, ((0, Bp - B), (0, Vp - V)))
    nh_p = jnp.pad(noise_h, ((0, Bp - B), (0, Hp - H)))
    nv_p = jnp.pad(noise_v, ((0, Bp - B), (0, Vp - V)))
    W_mx = jnp.pad(W, ((0, Vp - V), (0, Hp - H))).astype(mxu_dtype)
    vb_p = jnp.pad(v_bias, (0, Vp - V)).reshape(1, Vp).astype(jnp.float32)
    hb_p = jnp.pad(h_bias, (0, Hp - H)).reshape(1, Hp).astype(jnp.float32)

    grid = (Bp // TB,)

    in_specs = [
        pl.BlockSpec((TB, Vp), lambda i: (i, 0)),                  # v (batch-tiled)
        pl.BlockSpec((Vp, Hp), lambda i: (0, 0), **resident_kw),   # W (VMEM-resident)
        pl.BlockSpec((1, Vp), lambda i: (0, 0), **resident_kw),    # v_bias row
        pl.BlockSpec((1, Hp), lambda i: (0, 0), **resident_kw),    # h_bias row
        pl.BlockSpec((TB, Hp), lambda i: (i, 0)),                  # noise_h
        pl.BlockSpec((TB, Vp), lambda i: (i, 0)),                  # noise_v
    ]
    out_specs = [
        pl.BlockSpec((TB, Vp), lambda i: (i, 0)),   # v_sample
        pl.BlockSpec((TB, Vp), lambda i: (i, 0)),   # v_activation
        pl.BlockSpec((TB, Hp), lambda i: (i, 0)),   # h_activation
    ]
    out_shape = (
        jax.ShapeDtypeStruct((Bp, Vp), out_dtype),
        jax.ShapeDtypeStruct((Bp, Vp), out_dtype),
        jax.ShapeDtypeStruct((Bp, Hp), out_dtype),
    )

    # Advisory cost estimate so XLA schedules around the call correctly.
    flops = 4 * Bp * Vp * Hp                                    # two matmuls
    bytes_accessed = (
        Vp * Hp * mxu_itemsize                                  # W (single copy)
        + (2 * Bp * Vp + Bp * Hp) * in_itemsize                 # v + 2 noise tiles
        + (2 * Bp * Vp + Bp * Hp) * out_itemsize                # 3 outputs
        + (Vp + Hp) * 4                                         # biases
    )
    cost = pl.CostEstimate(flops=int(flops), transcendentals=0,
                           bytes_accessed=int(bytes_accessed))

    # Scoped-VMEM limit: footprint + headroom, clamped below physical VMEM with
    # a margin (no hard-coded 64 MiB cap — v6e/v5e have 128 MiB).
    footprint = _vmem_footprint(TB, Vp, Hp, in_itemsize, out_itemsize,
                                mxu_itemsize, w_bufs)
    vmem_limit = int(min(max(footprint + (4 << 20), 32 << 20),
                         max(vmem_cap - (24 << 20), 32 << 20)))

    vs, va, ha = pl.pallas_call(
        rbm_forward_kernel,
        out_shape=out_shape,
        grid_spec=pl.GridSpec(
            grid=grid,
            in_specs=in_specs,
            out_specs=out_specs,
        ),
        compiler_params=pltpu.CompilerParams(
            dimension_semantics=("parallel",),
            vmem_limit_bytes=vmem_limit,
        ),
        cost_estimate=cost,
    )(v_p, W_mx, vb_p, hb_p, nh_p, nv_p)

    # Strip padding.
    return vs[:B, :V], va[:B, :V], ha[:B, :H]


def rbm_forward_ref(v, W, v_bias, h_bias, noise_h, noise_v):
    h_act = jnp.maximum(v @ W + h_bias, 0.0)
    h_smp = h_act + noise_h * 0.01
    v_act = jnp.maximum(h_smp @ W.T + v_bias, 0.0)
    v_smp = v_act + noise_v * 0.01
    return v_smp, v_act, h_act


if __name__ == "__main__":
    batch, visible_dim, hidden_dim = 8, 16, 32

    key = jax.random.PRNGKey(0)
    k_v, k_w, k_nh, k_nv = jax.random.split(key, 4)

    # Parameter init matching the module's __init__:
    #   W = randn(visible, hidden) * 0.01 ; biases = zeros
    W = jax.random.normal(k_w, (visible_dim, hidden_dim), jnp.float32) * 0.01
    v_bias = jnp.zeros((visible_dim,), jnp.float32)
    h_bias = jnp.zeros((hidden_dim,), jnp.float32)

    # Input and the Gaussian noise used by sample_h / sample_v.
    v = jax.random.normal(k_v, (batch, visible_dim), jnp.float32)
    noise_h = jax.random.normal(k_nh, (batch, hidden_dim), jnp.float32)
    noise_v = jax.random.normal(k_nv, (batch, visible_dim), jnp.float32)

    r_vs, r_va, r_ha = rbm_forward_ref(v, W, v_bias, h_bias, noise_h, noise_v)

    # f32-input MXU path: tracks the plain-JAX reference tightly.
    vs, va, ha = rbm_forward(v, W, v_bias, h_bias, noise_h, noise_v,
                             mxu_dtype=jnp.float32)
    jax.block_until_ready((vs, va, ha))
    assert jnp.allclose(vs, r_vs, atol=1e-5, rtol=1e-4)
    assert jnp.allclose(va, r_va, atol=1e-5, rtol=1e-4)
    assert jnp.allclose(ha, r_ha, atol=1e-5, rtol=1e-4)

    # Default bf16-input MXU path (f32 accumulation): looser tolerance.
    vs_b, va_b, ha_b = rbm_forward(v, W, v_bias, h_bias, noise_h, noise_v)
    jax.block_until_ready((vs_b, va_b, ha_b))
    assert jnp.allclose(vs_b, r_vs, atol=5e-3, rtol=5e-2)
    assert jnp.allclose(va_b, r_va, atol=5e-3, rtol=5e-2)
    assert jnp.allclose(ha_b, r_ha, atol=5e-3, rtol=5e-2)

    print("KERNEL_OK")
</pallas_src>

<mosaic_0001>
module attributes {stable_mosaic.version = 11 : i64} {
  func.func @rbm_forward_kernel(%arg0: i32, %arg1: memref<8x128xf32, #tpu.memory_space<vmem>>, %arg2: memref<128x128xf32, #tpu.memory_space<vmem>>, %arg3: memref<1x128xf32, #tpu.memory_space<vmem>>, %arg4: memref<1x128xf32, #tpu.memory_space<vmem>>, %arg5: memref<8x128xf32, #tpu.memory_space<vmem>>, %arg6: memref<8x128xf32, #tpu.memory_space<vmem>>, %arg7: memref<8x128xf32, #tpu.memory_space<vmem>>, %arg8: memref<8x128xf32, #tpu.memory_space<vmem>>, %arg9: memref<8x128xf32, #tpu.memory_space<vmem>>) attributes {dimension_semantics = [#tpu.dimension_semantics<parallel>], iteration_bounds = array<i64: 1>, scalar_prefetch = 0 : i64, scratch_operands = 0 : i64, tpu.core_type = #tpu.core_type<tc>, window_params = [{transform_indices = @transform_0, window_bounds = array<i64: 8, 128>}, {pipeline_mode = #tpu.pipeline_mode<synchronous>, transform_indices = @transform_1, window_bounds = array<i64: 128, 128>}, {pipeline_mode = #tpu.pipeline_mode<synchronous>, transform_indices = @transform_2, window_bounds = array<i64: 1, 128>}, {pipeline_mode = #tpu.pipeline_mode<synchronous>, transform_indices = @transform_3, window_bounds = array<i64: 1, 128>}, {transform_indices = @transform_4, window_bounds = array<i64: 8, 128>}, {transform_indices = @transform_5, window_bounds = array<i64: 8, 128>}, {transform_indices = @transform_6, window_bounds = array<i64: 8, 128>}, {transform_indices = @transform_7, window_bounds = array<i64: 8, 128>}, {transform_indices = @transform_8, window_bounds = array<i64: 8, 128>}]} {
    %c0 = arith.constant 0 : index
    %c0_0 = arith.constant 0 : index
    %0 = vector.load %arg1[%c0, %c0_0] : memref<8x128xf32, #tpu.memory_space<vmem>>, vector<8x128xf32>
    %c0_1 = arith.constant 0 : index
    %c0_2 = arith.constant 0 : index
    %1 = vector.load %arg2[%c0_1, %c0_2] : memref<128x128xf32, #tpu.memory_space<vmem>>, vector<128x128xf32>
    %c0_3 = arith.constant 0 : index
    %c0_4 = arith.constant 0 : index
    %2 = vector.load %arg3[%c0_3, %c0_4] : memref<1x128xf32, #tpu.memory_space<vmem>>, vector<1x128xf32>
    %c0_5 = arith.constant 0 : index
    %c0_6 = arith.constant 0 : index
    %3 = vector.load %arg4[%c0_5, %c0_6] : memref<1x128xf32, #tpu.memory_space<vmem>>, vector<1x128xf32>
    %cst = arith.constant dense<0.000000e+00> : vector<8x128xf32>
    %4 = tpu.matmul %0, %1, %cst {dimension_numbers = #tpu.dot_dimension_numbers<[1], [0], [0], [1], [0, 0, 1, 1], [], []>} : vector<8x128xf32>, vector<128x128xf32>, vector<8x128xf32> -> vector<8x128xf32>
    %5 = vector.broadcast %3 : vector<1x128xf32> to vector<8x128xf32>
    %6 = arith.addf %4, %5 : vector<8x128xf32>
    %cst_7 = arith.constant 0.000000e+00 : f32
    %7 = vector.broadcast %cst_7 : f32 to vector<8x128xf32>
    %8 = arith.maximumf %6, %7 : vector<8x128xf32>
    %c0_8 = arith.constant 0 : index
    %c0_9 = arith.constant 0 : index
    %9 = vector.load %arg9[%c0_8, %c0_9] : memref<8x128xf32, #tpu.memory_space<vmem>>, vector<8x128xf32>
    tpu.vector_store %arg9[%c0_8, %c0_9], %8 {strides = array<i32>} : memref<8x128xf32, #tpu.memory_space<vmem>>, vector<8x128xf32>,
    %c0_10 = arith.constant 0 : index
    %c0_11 = arith.constant 0 : index
    %10 = vector.load %arg5[%c0_10, %c0_11] : memref<8x128xf32, #tpu.memory_space<vmem>>, vector<8x128xf32>
    %cst_12 = arith.constant 0.00999999977 : f32
    %11 = vector.broadcast %cst_12 : f32 to vector<8x128xf32>
    %12 = arith.mulf %10, %11 : vector<8x128xf32>
    %13 = arith.addf %8, %12 : vector<8x128xf32>
    %cst_13 = arith.constant dense<0.000000e+00> : vector<8x128xf32>
    %14 = tpu.matmul %13, %1, %cst_13 {dimension_numbers = #tpu.dot_dimension_numbers<[1], [1], [0], [0], [0, 0, 1, 0], [], []>} : vector<8x128xf32>, vector<128x128xf32>, vector<8x128xf32> -> vector<8x128xf32>
    %15 = vector.broadcast %2 : vector<1x128xf32> to vector<8x128xf32>
    %16 = arith.addf %14, %15 : vector<8x128xf32>
    %cst_14 = arith.constant 0.000000e+00 : f32
    %17 = vector.broadcast %cst_14 : f32 to vector<8x128xf32>
    %18 = arith.maximumf %16, %17 : vector<8x128xf32>
    %c0_15 = arith.constant 0 : index
    %c0_16 = arith.constant 0 : index
    %19 = vector.load %arg8[%c0_15, %c0_16] : memref<8x128xf32, #tpu.memory_space<vmem>>, vector<8x128xf32>
    tpu.vector_store %arg8[%c0_15, %c0_16], %18 {strides = array<i32>} : memref<8x128xf32, #tpu.memory_space<vmem>>, vector<8x128xf32>,
    %c0_17 = arith.constant 0 : index
    %c0_18 = arith.constant 0 : index
    %20 = vector.load %arg6[%c0_17, %c0_18] : memref<8x128xf32, #tpu.memory_space<vmem>>, vector<8x128xf32>
    %cst_19 = arith.constant 0.00999999977 : f32
    %21 = vector.broadcast %cst_19 : f32 to vector<8x128xf32>
    %22 = arith.mulf %20, %21 : vector<8x128xf32>
    %23 = arith.addf %18, %22 : vector<8x128xf32>
    %c0_20 = arith.constant 0 : index
    %c0_21 = arith.constant 0 : index
    %24 = vector.load %arg7[%c0_20, %c0_21] : memref<8x128xf32, #tpu.memory_space<vmem>>, vector<8x128xf32>
    tpu.vector_store %arg7[%c0_20, %c0_21], %23 {strides = array<i32>} : memref<8x128xf32, #tpu.memory_space<vmem>>, vector<8x128xf32>,
    return
  }
  func.func @transform_0(%arg0: i32) -> (i32, i32) {
    %c0_i32 = arith.constant 0 : i32
    %c0_i32_0 = arith.constant 0 : i32
    return %arg0, %c0_i32 : i32, i32
  }
  func.func @transform_1(%arg0: i32) -> (i32, i32) {
    %c0_i32 = arith.constant 0 : i32
    %c0_i32_0 = arith.constant 0 : i32
    %c0_i32_1 = arith.constant 0 : i32
    return %c0_i32, %c0_i32_0 : i32, i32
  }
  func.func @transform_2(%arg0: i32) -> (i32, i32) {
    %c0_i32 = arith.constant 0 : i32
    %c0_i32_0 = arith.constant 0 : i32
    %c0_i32_1 = arith.constant 0 : i32
    return %c0_i32, %c0_i32_0 : i32, i32
  }
  func.func @transform_3(%arg0: i32) -> (i32, i32) {
    %c0_i32 = arith.constant 0 : i32
    %c0_i32_0 = arith.constant 0 : i32
    %c0_i32_1 = arith.constant 0 : i32
    return %c0_i32, %c0_i32_0 : i32, i32
  }
  func.func @transform_4(%arg0: i32) -> (i32, i32) {
    %c0_i32 = arith.constant 0 : i32
    %c0_i32_0 = arith.constant 0 : i32
    return %arg0, %c0_i32 : i32, i32
  }
  func.func @transform_5(%arg0: i32) -> (i32, i32) {
    %c0_i32 = arith.constant 0 : i32
    %c0_i32_0 = arith.constant 0 : i32
    return %arg0, %c0_i32 : i32, i32
  }
  func.func @transform_6(%arg0: i32) -> (i32, i32) {
    %c0_i32 = arith.constant 0 : i32
    %c0_i32_0 = arith.constant 0 : i32
    return %arg0, %c0_i32 : i32, i32
  }
  func.func @transform_7(%arg0: i32) -> (i32, i32) {
    %c0_i32 = arith.constant 0 : i32
    %c0_i32_0 = arith.constant 0 : i32
    return %arg0, %c0_i32 : i32, i32
  }
  func.func @transform_8(%arg0: i32) -> (i32, i32) {
    %c0_i32 = arith.constant 0 : i32
    %c0_i32_0 = arith.constant 0 : i32
    return %arg0, %c0_i32 : i32, i32
  }
}

</mosaic_0001>

<llo_original>
// kernel: rbm_forward.1
$region0: #{rbm_forward.1}
  #allocation0 [shape = 'u32[]', space=smem, size = 0x4, offset = 0x4, fixed_abs, tag = 'smem constant byte address 0x4 - core index']
  #allocation1 [shape = 'u32[144,128]{1,0:T(1,128)}', space=vmem, size = 0x12000, scoped, tag = 'internal scratch']
  %s0 = inlined_call_operand.vmem [shape: f32[8,128], index: 0, kind: input, shape index: {}]
  %s1 = inlined_call_operand.vmem [shape: f32[128,128], index: 1, kind: input, shape index: {}]
  %s2 = inlined_call_operand.vmem [shape: f32[1,128], index: 2, kind: input, shape index: {}]
  %s3 = inlined_call_operand.vmem [shape: f32[1,128], index: 3, kind: input, shape index: {}]
  %s4 = inlined_call_operand.vmem [shape: f32[8,128], index: 4, kind: input, shape index: {}]
  %s5 = inlined_call_operand.vmem [shape: f32[8,128], index: 5, kind: input, shape index: {}]
  %s6 = inlined_call_operand.hbm [shape: f32[8,128], index: 6, kind: output, shape index: {0}]
  %s7 = inlined_call_operand.hbm [shape: f32[8,128], index: 7, kind: output, shape index: {1}]
  %s8 = inlined_call_operand.hbm [shape: f32[8,128], index: 8, kind: output, shape index: {2}]
  %9 = xla_tuple %s6, %s7, %s8
  %s10 = sld [smem:[#allocation0]]
  $region50: #{rbm_forward.1} parent=0
    _
  %s12 = ssub.s32 1, %s10
  %s13 = scalar_select 0, %s12, %s10
  $region1: #{rbm_forward.1} parent=0
    #allocation2 [shape = 'u8[4096]{0}', space=vmem, size = 0x1000, scoped, tag = 'output window, operand 0, single buffered']
    #allocation3 [shape = 's32[1]{0}', space=sflag, size = 0x4, scoped, tag = 'scoped memory for rbm_forward.1']
    #allocation4 [shape = 'u8[4096]{0}', space=vmem, size = 0x1000, scoped, tag = 'output window, operand 1, single buffered']
    #allocation5 [shape = 's32[1]{0}', space=sflag, size = 0x4, scoped, tag = 'scoped memory for rbm_forward.1']
    #allocation6 [shape = 'u8[4096]{0}', space=vmem, size = 0x1000, scoped, tag = 'output window, operand 2, single buffered']
    %14 = vsyncpa [#allocation3], 0
    %15 = vsyncpa [#allocation5], 0
    // Predicated region
    $region2: #{rbm_forward.1} parent=1 // pred_check
      _
    $region3: #{rbm_forward.1} parent=1 // pred_check_branch
      %17 = sbr.rel (0) target = $region5
    $region4: #{rbm_forward.1} parent=1 // pred_region
      _
    $region5: #{rbm_forward.1} parent=1 // pred_fallthru
      _
    // Predicated region
    $region6: #{rbm_forward.1} parent=1 // pred_check
      _
    $region7: #{rbm_forward.1} parent=1 // pred_check_branch
      %19 = sbr.rel (0) target = $region9
    $region8: #{rbm_forward.1} parent=1 // pred_region
      _
    $region9: #{rbm_forward.1} parent=1 // pred_fallthru
      _
    // Predicated region
    $region10: #{rbm_forward.1} parent=1 // pred_check
      _
    $region11: #{rbm_forward.1} parent=1 // pred_check_branch
      %21 = sbr.rel (0) target = $region13
    $region12: #{rbm_forward.1} parent=1 // pred_region
      _
    $region13: #{rbm_forward.1} parent=1 // pred_fallthru
      _
    // Predicated region
    $region14: #{rbm_forward.1} parent=1 // pred_check
      _
    $region15: #{rbm_forward.1} parent=1 // pred_check_branch
      %23 = sbr.rel (0) target = $region17
    $region16: #{rbm_forward.1} parent=1 // pred_region
      _
    $region17: #{rbm_forward.1} parent=1 // pred_fallthru
      _
    // Predicated region
    $region18: #{rbm_forward.1} parent=1 // pred_check
      _
    $region19: #{rbm_forward.1} parent=1 // pred_check_branch
      %25 = sbr.rel (0) target = $region21
    $region20: #{rbm_forward.1} parent=1 // pred_region
      _
    $region21: #{rbm_forward.1} parent=1 // pred_fallthru
      _
    // Predicated region
    $region22: #{rbm_forward.1} parent=1 // pred_check
      _
    $region23: #{rbm_forward.1} parent=1 // pred_check_branch
      %27 = sbr.rel (0) target = $region25
    $region24: #{rbm_forward.1} parent=1 // pred_region
      _
    $region25: #{rbm_forward.1} parent=1 // pred_fallthru
      _
    %v28 = vld [vmem:[%s0] sm:$0xff]
    %v29 = vld [vmem:[%s1] sm:$0xff]
    %v30 = vld [vmem:[%s1 + $0x8] sm:$0xff]
    %v31 = vld [vmem:[%s1 + $0x10] sm:$0xff]
    %v32 = vld [vmem:[%s1 + $0x18] sm:$0xff]
    %v33 = vld [vmem:[%s1 + $0x20] sm:$0xff]
    %v34 = vld [vmem:[%s1 + $0x28] sm:$0xff]
    %v35 = vld [vmem:[%s1 + $0x30] sm:$0xff]
    %v36 = vld [vmem:[%s1 + $0x38] sm:$0xff]
    %v37 = vld [vmem:[%s1 + $0x40] sm:$0xff]
    %v38 = vld [vmem:[%s1 + $0x48] sm:$0xff]
    %v39 = vld [vmem:[%s1 + $0x50] sm:$0xff]
    %v40 = vld [vmem:[%s1 + $0x58] sm:$0xff]
    %v41 = vld [vmem:[%s1 + $0x60] sm:$0xff]
    %v42 = vld [vmem:[%s1 + $0x68] sm:$0xff]
    %v43 = vld [vmem:[%s1 + $0x70] sm:$0xff]
    %v44 = vld [vmem:[%s1 + $0x78] sm:$0xff]
    %v45 = vld [vmem:[%s2] sm:$0x1]
    %v46 = vld [vmem:[%s3] sm:$0x1]
    %v48 = vlaneseq
    %v49 = vshrl.u32 %v48, 7
    %v50 = vsub.s32 0, %v49
    %v51 = vrot.slane %v46, %v50
    %53 = vmatprep.subr.mxu0 0.0
    %54 = vmatpush1.msra.mxu0 %v29
    %55 = vmatprep.subr.mxu0 0.0
    %56 = vmatpush1.msra.mxu0 %v30
    %57 = vmatprep.subr.mxu0 0.0
    %58 = vmatpush1.msra.mxu0 %v31
    %59 = vmatprep.subr.mxu0 0.0
    %60 = vmatpush1.msra.mxu0 %v32
    %61 = vmatprep.subr.mxu0 0.0
    %62 = vmatpush1.msra.mxu0 %v33
    %63 = vmatprep.subr.mxu0 0.0
    %64 = vmatpush1.msra.mxu0 %v34
    %65 = vmatprep.subr.mxu0 0.0
    %66 = vmatpush1.msra.mxu0 %v35
    %67 = vmatprep.subr.mxu0 0.0
    %68 = vmatpush1.msra.mxu0 %v36
    %69 = vmatprep.subr.mxu0 0.0
    %70 = vmatpush1.msra.mxu0 %v37
    %71 = vmatprep.subr.mxu0 0.0
    %72 = vmatpush1.msra.mxu0 %v38
    %73 = vmatprep.subr.mxu0 0.0
    %74 = vmatpush1.msra.mxu0 %v39
    %75 = vmatprep.subr.mxu0 0.0
    %76 = vmatpush1.msra.mxu0 %v40
    %77 = vmatprep.subr.mxu0 0.0
    %78 = vmatpush1.msra.mxu0 %v41
    %79 = vmatprep.subr.mxu0 0.0
    %80 = vmatpush1.msra.mxu0 %v42
    %81 = vmatprep.subr.mxu0 0.0
    %82 = vmatpush1.msra.mxu0 %v43
    %83 = vmatprep.subr.mxu0 0.0
    %84 = vmatpush1.msra.mxu0 %v44
    %85 = vmatprep.subr.mxu0 0.0
    %86 = vmatpush1.msra.mxu0 0.0
    %87 = vmatprep.subr.mxu0 0.0
    %88 = vmatpush1.msra.mxu0 0.0
    %89 = vmatprep.subr.mxu0 0.0
    %90 = vmatpush1.msra.mxu0 0.0
    %91 = vmatprep.subr.mxu0 0.0
    %92 = vmatpush1.msra.mxu0 0.0
    %93 = vmatprep.subr.mxu0 0.0
    %94 = vmatpush1.msra.mxu0 0.0
    %95 = vmatprep.subr.mxu0 0.0
    %96 = vmatpush1.msra.mxu0 0.0
    %97 = vmatprep.subr.mxu0 0.0
    %98 = vmatpush1.msra.mxu0 0.0
    %99 = vmatprep.subr.mxu0 0.0
    %100 = vmatpush1.msra.mxu0 0.0
    %101 = vmatprep.subr.mxu0 0.0
    %102 = vmatpush1.msra.mxu0 0.0
    %103 = vmatprep.subr.mxu0 0.0
    %104 = vmatpush1.msra.mxu0 0.0
    %105 = vmatprep.subr.mxu0 0.0
    %106 = vmatpush1.msra.mxu0 0.0
    %107 = vmatprep.subr.mxu0 0.0
    %108 = vmatpush1.msra.mxu0 0.0
    %109 = vmatprep.subr.mxu0 0.0
    %110 = vmatpush1.msra.mxu0 0.0
    %111 = vmatprep.subr.mxu0 0.0
    %112 = vmatpush1.msra.mxu0 0.0
    %113 = vmatprep.subr.mxu0 0.0
    %114 = vmatpush1.msra.mxu0 0.0
    %115 = vmatprep.subr.mxu0 0.0
    %116 = vmatpush1.msra.mxu0 0.0
    %117 = vmatprep.mubr.f32.mxu0 0.0
    %118 = vmatmul.mubr.f32.gmra.mrb[0].mxu0 %v28
    %v119 = vpop.f32.mrb[0].mxu0
    %v120 = vadd.f32 %v51, %v119
    %v121 = vpop.f32.mrb[0].mxu0
    %122 = vdwg.mxu0
    %v123 = vmax.f32 %v120, 0.0
    %124 = vst [vmem:[#allocation6] sm:$0xff] %v123
    %v125 = vld [vmem:[%s4] sm:$0xff]
    %v126 = vmul.f32 %v125, 0.01
    %v127 = vadd.f32 %v123, %v126
    %v129 = vlaneseq
    %v130 = vshrl.u32 %v129, 7
    %v131 = vsub.s32 0, %v130
    %v132 = vrot.slane %v45, %v131
    %134 = vmatprep.subr.mxu0 0.0
    %135 = vmatpush1.xpose.msra.mxu0 %v29
    %136 = vmatprep.subr.mxu0 0.0
    %137 = vmatpush1.xpose.msra.mxu0 %v30
    %138 = vmatprep.subr.mxu0 0.0
    %139 = vmatpush1.xpose.msra.mxu0 %v31
    %140 = vmatprep.subr.mxu0 0.0
    %141 = vmatpush1.xpose.msra.mxu0 %v32
    %142 = vmatprep.subr.mxu0 0.0
    %143 = vmatpush1.xpose.msra.mxu0 %v33
    %144 = vmatprep.subr.mxu0 0.0
    %145 = vmatpush1.xpose.msra.mxu0 %v34
    %146 = vmatprep.subr.mxu0 0.0
    %147 = vmatpush1.xpose.msra.mxu0 %v35
    %148 = vmatprep.subr.mxu0 0.0
    %149 = vmatpush1.xpose.msra.mxu0 %v36
    %150 = vmatprep.subr.mxu0 0.0
    %151 = vmatpush1.xpose.msra.mxu0 %v37
    %152 = vmatprep.subr.mxu0 0.0
    %153 = vmatpush1.xpose.msra.mxu0 %v38
    %154 = vmatprep.subr.mxu0 0.0
    %155 = vmatpush1.xpose.msra.mxu0 %v39
    %156 = vmatprep.subr.mxu0 0.0
    %157 = vmatpush1.xpose.msra.mxu0 %v40
    %158 = vmatprep.subr.mxu0 0.0
    %159 = vmatpush1.xpose.msra.mxu0 %v41
    %160 = vmatprep.subr.mxu0 0.0
    %161 = vmatpush1.xpose.msra.mxu0 %v42
    %162 = vmatprep.subr.mxu0 0.0
    %163 = vmatpush1.xpose.msra.mxu0 %v43
    %164 = vmatprep.subr.mxu0 0.0
    %165 = vmatpush1.xpose.msra.mxu0 %v44
    %166 = vmatprep.subr.mxu0 0.0
    %167 = vmatpush1.xpose.msra.mxu0 0.0
    %168 = vmatprep.subr.mxu0 0.0
    %169 = vmatpush1.xpose.msra.mxu0 0.0
    %170 = vmatprep.subr.mxu0 0.0
    %171 = vmatpush1.xpose.msra.mxu0 0.0
    %172 = vmatprep.subr.mxu0 0.0
    %173 = vmatpush1.xpose.msra.mxu0 0.0
    %174 = vmatprep.subr.mxu0 0.0
    %175 = vmatpush1.xpose.msra.mxu0 0.0
    %176 = vmatprep.subr.mxu0 0.0
    %177 = vmatpush1.xpose.msra.mxu0 0.0
    %178 = vmatprep.subr.mxu0 0.0
    %179 = vmatpush1.xpose.msra.mxu0 0.0
    %180 = vmatprep.subr.mxu0 0.0
    %181 = vmatpush1.xpose.msra.mxu0 0.0
    %182 = vmatprep.subr.mxu0 0.0
    %183 = vmatpush1.xpose.msra.mxu0 0.0
    %184 = vmatprep.subr.mxu0 0.0
    %185 = vmatpush1.xpose.msra.mxu0 0.0
    %186 = vmatprep.subr.mxu0 0.0
    %187 = vmatpush1.xpose.msra.mxu0 0.0
    %188 = vmatprep.subr.mxu0 0.0
    %189 = vmatpush1.xpose.msra.mxu0 0.0
    %190 = vmatprep.subr.mxu0 0.0
    %191 = vmatpush1.xpose.msra.mxu0 0.0
    %192 = vmatprep.subr.mxu0 0.0
    %193 = vmatpush1.xpose.msra.mxu0 0.0
    %194 = vmatprep.subr.mxu0 0.0
    %195 = vmatpush1.xpose.msra.mxu0 0.0
    %196 = vmatprep.subr.mxu0 0.0
    %197 = vmatpush1.xpose.msra.mxu0 0.0
    %198 = vmatprep.mubr.f32.mxu0 0.0
    %199 = vmatmul.mubr.f32.gmra.mrb[0].mxu0 %v127
    %v200 = vpop.f32.mrb[0].mxu0
    %v201 = vadd.f32 %v132, %v200
    %v202 = vpop.f32.mrb[0].mxu0
    %203 = vdwg.mxu0
    %v204 = vmax.f32 %v201, 0.0
    %205 = vst [vmem:[#allocation4] sm:$0xff] %v204
    %v206 = vld [vmem:[%s5] sm:$0xff]
    %v207 = vmul.f32 %v206, 0.01
    %v208 = vadd.f32 %v204, %v207
    %209 = vst [vmem:[#allocation2] sm:$0xff] %v208
    // Predicated region
    $region26: #{rbm_forward.1} parent=1 // pred_check
      _
    $region27: #{rbm_forward.1} parent=1 // pred_check_branch
      %211 = sbr.rel (0) target = $region29
    $region28: #{rbm_forward.1} parent=1 // pred_region
      %s213 = ssub.s32 128, 128
      %214 = vsyncadd [#allocation3], %s213
      %s216 = sshll.u32 [#allocation2], 4
      %s217 = int_to_ptr.vmem [resolvable:$true] %s216
      %219 = dma.vmem_to_hbm [thread:$0]  %s217, 128, %s6, [#allocation3]
    $region29: #{rbm_forward.1} parent=1 // pred_fallthru
      _
    // Predicated region
    $region30: #{rbm_forward.1} parent=1 // pred_check
      _
    $region31: #{rbm_forward.1} parent=1 // pred_check_branch
      %221 = sbr.rel (0) target = $region33
    $region32: #{rbm_forward.1} parent=1 // pred_region
      %s223 = ssub.s32 128, 128
      %224 = vsyncadd [#allocation5], %s223
      %s226 = sshll.u32 [#allocation4], 4
      %s227 = int_to_ptr.vmem [resolvable:$true] %s226
      %229 = dma.vmem_to_hbm [thread:$0]  %s227, 128, %s7, [#allocation5]
    $region33: #{rbm_forward.1} parent=1 // pred_fallthru
      _
    // Predicated region
    $region34: #{rbm_forward.1} parent=1 // pred_check
      _
    $region35: #{rbm_forward.1} parent=1 // pred_check_branch
      %231 = sbr.rel (0) target = $region37
    $region36: #{rbm_forward.1} parent=1 // pred_region
      %s233 = ssub.s32 128, 128
      %234 = vsyncadd [#allocation5], %s233
      %s236 = sshll.u32 [#allocation6], 4
      %s237 = int_to_ptr.vmem [resolvable:$true] %s236
      %239 = dma.vmem_to_hbm [thread:$0]  %s237, 128, %s8, [#allocation5]
    $region37: #{rbm_forward.1} parent=1 // pred_fallthru
      _
    // Predicated region
    $region38: #{rbm_forward.1} parent=1 // pred_check
      _
    $region39: #{rbm_forward.1} parent=1 // pred_check_branch
      %241 = sbr.rel (0) target = $region41
    $region40: #{rbm_forward.1} parent=1 // pred_region
      %242 = dma.done [#allocation3], 128
    $region41: #{rbm_forward.1} parent=1 // pred_fallthru
      _
    // Predicated region
    $region42: #{rbm_forward.1} parent=1 // pred_check
      _
    $region43: #{rbm_forward.1} parent=1 // pred_check_branch
      %244 = sbr.rel (0) target = $region45
    $region44: #{rbm_forward.1} parent=1 // pred_region
      %245 = dma.done [#allocation5], 128
    $region45: #{rbm_forward.1} parent=1 // pred_fallthru
      _
    // Predicated region
    $region46: #{rbm_forward.1} parent=1 // pred_check
      _
    $region47: #{rbm_forward.1} parent=1 // pred_check_branch
      %247 = sbr.rel (0) target = $region49
    $region48: #{rbm_forward.1} parent=1 // pred_region
      %248 = dma.done [#allocation5], 128
    $region49: #{rbm_forward.1} parent=1 // pred_fallthru
      _
    %249 = vsyncpa [#allocation3], 1
    %250 = vsyncpa [#allocation5], 1

</llo_original>
